<compile_context>
chip_gen: v6e
topology: v6e:2x2x1
jax: 0.10.0
libtpu: 0.0.40
codegen_flags: <defaults>
</compile_context>

<pallas_src>
import functools

import jax
import jax.numpy as jnp
from jax.experimental import pallas as pl
from jax.experimental.pallas import tpu as pltpu


def _make_fused_mlp_kernel(num_layers):
    """Kernel: relu(...relu(relu(x@W0 + b0)@W1 + b1)...) chained fully in-core."""

    def kernel(*refs):
        x_ref = refs[0]
        o_ref = refs[-1]
        wb_refs = refs[1:-1]  # (w0, b0, w1, b1, ...)

        h = x_ref[...]  # (tm, H0) in compute dtype (bf16)
        for l in range(num_layers):
            w_ref = wb_refs[2 * l]
            b_ref = wb_refs[2 * l + 1]
            # MXU matmul with f32 accumulation.
            y = jnp.dot(h, w_ref[...], preferred_element_type=jnp.float32)
            # BN already folded into W/b -> epilogue is bias + ReLU in f32.
            y = jnp.maximum(y + b_ref[...], 0.0)
            if l + 1 < num_layers:
                h = y.astype(w_ref.dtype)  # back to bf16 for the next MXU pass
            else:
                o_ref[...] = y.astype(o_ref.dtype)

    return kernel


def fused_mlp_forward(x, weights, biases, *, tm=None,
                      compute_dtype=jnp.bfloat16, out_dtype=jnp.float32):
    """Fused MLP forward.

    x:        (N, H0)
    weights:  list of (H_l, H_{l+1}) arrays (BN already folded in, pre-transposed
              from PyTorch's (out, in) so the kernel does x @ W)
    biases:   list of (H_{l+1},) arrays (BN folded in), kept in f32
    """
    n, h_in = x.shape
    num_layers = len(weights)
    assert num_layers >= 1 and weights[0].shape[0] == h_in

    if tm is None:
        tm = n  # whole batch in one tile; grid=(1,)
    assert n % tm == 0, f"batch {n} must be divisible by tile {tm}"
    assert tm % 8 == 0, f"batch tile {tm} must be a multiple of 8 (sublane)"

    args = [x.astype(compute_dtype)]
    in_specs = [pl.BlockSpec((tm, h_in), lambda i: (i, 0))]  # x tile
    for w, b in zip(weights, biases):
        hi, ho = w.shape
        args.append(w.astype(compute_dtype))
        in_specs.append(pl.BlockSpec((hi, ho), lambda i: (0, 0)))   # resident weight
        args.append(b.astype(jnp.float32).reshape(1, ho))
        in_specs.append(pl.BlockSpec((1, ho), lambda i: (0, 0)))    # resident bias
    h_out = weights[-1].shape[1]

    return pl.pallas_call(
        _make_fused_mlp_kernel(num_layers),
        out_shape=jax.ShapeDtypeStruct((n, h_out), out_dtype),
        grid_spec=pltpu.PrefetchScalarGridSpec(
            num_scalar_prefetch=0,
            grid=(n // tm,),
            in_specs=in_specs,
            out_specs=pl.BlockSpec((tm, h_out), lambda i: (i, 0)),
        ),
        compiler_params=pltpu.CompilerParams(
            dimension_semantics=("parallel",),
        ),
    )(*args)


def _fold_bn_into_linear(p, eps):
    """Fold inference BatchNorm1d into the preceding Linear: W' = W*s, b' = b*s + t."""
    scale = p["gamma"] * jax.lax.rsqrt(p["var"] + eps)       # (H_out,)
    shift = p["beta"] - p["mean"] * scale                    # (H_out,)
    w_fused = p["w"] * scale[None, :]                        # (H_in, H_out)
    b_fused = p["b"] * scale + shift                         # (H_out,)
    return w_fused, b_fused


@functools.partial(jax.jit, static_argnames=("tm", "compute_dtype"))
def mlp_layers_forward(x, params, *, tm=None, eps=1e-5,
                       compute_dtype=jnp.bfloat16):
    """Full MLPLayers forward (inference): [Dropout -> Linear -> BN -> ReLU] * L.

    Dropout is identity at inference; BN uses running stats folded into W/b.
    """
    weights, biases = [], []
    for p in params:
        w, b = _fold_bn_into_linear(p, eps)
        weights.append(w)
        biases.append(b)
    return fused_mlp_forward(x, weights, biases, tm=tm,
                             compute_dtype=compute_dtype)


def init_mlp_params(layers, key):
    """Deterministic parameter init mimicking nn.Linear / nn.BatchNorm1d defaults."""
    params = []
    for in_size, out_size in zip(layers[:-1], layers[1:]):
        key, kw, kb = jax.random.split(key, 3)
        bound = 1.0 / jnp.sqrt(jnp.float32(in_size))
        # PyTorch stores weight as (out, in); we keep it as (in, out) for x @ W.
        w = jax.random.uniform(kw, (in_size, out_size), jnp.float32,
                               minval=-bound, maxval=bound)
        b = jax.random.uniform(kb, (out_size,), jnp.float32,
                               minval=-bound, maxval=bound)
        # BatchNorm1d defaults: gamma=1, beta=0, running_mean=0, running_var=1.
        params.append(dict(
            w=w, b=b,
            gamma=jnp.ones((out_size,), jnp.float32),
            beta=jnp.zeros((out_size,), jnp.float32),
            mean=jnp.zeros((out_size,), jnp.float32),
            var=jnp.ones((out_size,), jnp.float32),
        ))
    return params


def _reference_forward(x, params, eps=1e-5):
    """Pure-JAX f32 reference of the inference forward (for correctness check)."""
    h = x
    for p in params:
        scale = p["gamma"] * jax.lax.rsqrt(p["var"] + eps)
        shift = p["beta"] - p["mean"] * scale
        y = h @ p["w"] + p["b"]
        y = y * scale + shift
        h = jnp.maximum(y, 0.0)
    return h


if __name__ == "__main__":
    layers = [64, 32, 16]   # H_in=64 -> 32 -> H_out=16 (matches the docstring example)
    batch = 128
    dropout_p = 0.2         # unused at inference (identity)

    key = jax.random.PRNGKey(0)
    key, kx = jax.random.split(key)
    x = jax.random.normal(kx, (batch, layers[0]), jnp.float32)

    params = init_mlp_params(layers, key)

    out = mlp_layers_forward(x, params)
    out = jax.block_until_ready(out)

    assert out.shape == (batch, layers[-1]), out.shape
    assert bool(jnp.all(out >= 0.0))            # ReLU output is non-negative
    assert bool(jnp.all(jnp.isfinite(out)))

    # Correctness vs. f32 reference (bf16 matmul -> generous tolerance).
    ref = _reference_forward(x, params)
    assert bool(jnp.allclose(out, ref, atol=5e-2, rtol=5e-2)), \
        float(jnp.max(jnp.abs(out - ref)))

    print("KERNEL_OK")
</pallas_src>

<mosaic_0001>
module attributes {stable_mosaic.version = 11 : i64} {
  func.func @kernel(%arg0: i32, %arg1: memref<128x64xbf16, #tpu.memory_space<vmem>>, %arg2: memref<64x32xbf16, #tpu.memory_space<vmem>>, %arg3: memref<1x32xf32, #tpu.memory_space<vmem>>, %arg4: memref<32x16xbf16, #tpu.memory_space<vmem>>, %arg5: memref<1x16xf32, #tpu.memory_space<vmem>>, %arg6: memref<128x16xf32, #tpu.memory_space<vmem>>) attributes {dimension_semantics = [#tpu.dimension_semantics<parallel>], iteration_bounds = array<i64: 1>, scalar_prefetch = 0 : i64, scratch_operands = 0 : i64, tpu.core_type = #tpu.core_type<tc>, window_params = [{transform_indices = @transform_0, window_bounds = array<i64: 128, 64>}, {pipeline_mode = #tpu.pipeline_mode<synchronous>, transform_indices = @transform_1, window_bounds = array<i64: 64, 32>}, {pipeline_mode = #tpu.pipeline_mode<synchronous>, transform_indices = @transform_2, window_bounds = array<i64: 1, 32>}, {pipeline_mode = #tpu.pipeline_mode<synchronous>, transform_indices = @transform_3, window_bounds = array<i64: 32, 16>}, {pipeline_mode = #tpu.pipeline_mode<synchronous>, transform_indices = @transform_4, window_bounds = array<i64: 1, 16>}, {transform_indices = @transform_5, window_bounds = array<i64: 128, 16>}]} {
    %c0 = arith.constant 0 : index
    %c0_0 = arith.constant 0 : index
    %0 = vector.load %arg1[%c0, %c0_0] : memref<128x64xbf16, #tpu.memory_space<vmem>>, vector<128x64xbf16>
    %c0_1 = arith.constant 0 : index
    %c0_2 = arith.constant 0 : index
    %1 = vector.load %arg2[%c0_1, %c0_2] : memref<64x32xbf16, #tpu.memory_space<vmem>>, vector<64x32xbf16>
    %cst = arith.constant dense<0.000000e+00> : vector<128x32xf32>
    %2 = tpu.matmul %0, %1, %cst {dimension_numbers = #tpu.dot_dimension_numbers<[1], [0], [0], [1], [0, 0, 1, 1], [], []>} : vector<128x64xbf16>, vector<64x32xbf16>, vector<128x32xf32> -> vector<128x32xf32>
    %c0_3 = arith.constant 0 : index
    %c0_4 = arith.constant 0 : index
    %3 = vector.load %arg3[%c0_3, %c0_4] : memref<1x32xf32, #tpu.memory_space<vmem>>, vector<1x32xf32>
    %4 = vector.broadcast %3 : vector<1x32xf32> to vector<128x32xf32>
    %5 = arith.addf %2, %4 : vector<128x32xf32>
    %cst_5 = arith.constant 0.000000e+00 : f32
    %6 = vector.broadcast %cst_5 : f32 to vector<128x32xf32>
    %7 = arith.maximumf %5, %6 : vector<128x32xf32>
    %8 = arith.truncf %7 : vector<128x32xf32> to vector<128x32xbf16>
    %c0_6 = arith.constant 0 : index
    %c0_7 = arith.constant 0 : index
    %9 = vector.load %arg4[%c0_6, %c0_7] : memref<32x16xbf16, #tpu.memory_space<vmem>>, vector<32x16xbf16>
    %cst_8 = arith.constant dense<0.000000e+00> : vector<128x16xf32>
    %10 = tpu.matmul %8, %9, %cst_8 {dimension_numbers = #tpu.dot_dimension_numbers<[1], [0], [0], [1], [0, 0, 1, 1], [], []>} : vector<128x32xbf16>, vector<32x16xbf16>, vector<128x16xf32> -> vector<128x16xf32>
    %c0_9 = arith.constant 0 : index
    %c0_10 = arith.constant 0 : index
    %11 = vector.load %arg5[%c0_9, %c0_10] : memref<1x16xf32, #tpu.memory_space<vmem>>, vector<1x16xf32>
    %12 = vector.broadcast %11 : vector<1x16xf32> to vector<128x16xf32>
    %13 = arith.addf %10, %12 : vector<128x16xf32>
    %cst_11 = arith.constant 0.000000e+00 : f32
    %14 = vector.broadcast %cst_11 : f32 to vector<128x16xf32>
    %15 = arith.maximumf %13, %14 : vector<128x16xf32>
    %c0_12 = arith.constant 0 : index
    %c0_13 = arith.constant 0 : index
    %16 = vector.load %arg6[%c0_12, %c0_13] : memref<128x16xf32, #tpu.memory_space<vmem>>, vector<128x16xf32>
    tpu.vector_store %arg6[%c0_12, %c0_13], %15 {strides = array<i32>} : memref<128x16xf32, #tpu.memory_space<vmem>>, vector<128x16xf32>,
    return
  }
  func.func @transform_0(%arg0: i32) -> (i32, i32) {
    %c0_i32 = arith.constant 0 : i32
    %c0_i32_0 = arith.constant 0 : i32
    return %arg0, %c0_i32 : i32, i32
  }
  func.func @transform_1(%arg0: i32) -> (i32, i32) {
    %c0_i32 = arith.constant 0 : i32
    %c0_i32_0 = arith.constant 0 : i32
    %c0_i32_1 = arith.constant 0 : i32
    return %c0_i32, %c0_i32_0 : i32, i32
  }
  func.func @transform_2(%arg0: i32) -> (i32, i32) {
    %c0_i32 = arith.constant 0 : i32
    %c0_i32_0 = arith.constant 0 : i32
    %c0_i32_1 = arith.constant 0 : i32
    return %c0_i32, %c0_i32_0 : i32, i32
  }
  func.func @transform_3(%arg0: i32) -> (i32, i32) {
    %c0_i32 = arith.constant 0 : i32
    %c0_i32_0 = arith.constant 0 : i32
    %c0_i32_1 = arith.constant 0 : i32
    return %c0_i32, %c0_i32_0 : i32, i32
  }
  func.func @transform_4(%arg0: i32) -> (i32, i32) {
    %c0_i32 = arith.constant 0 : i32
    %c0_i32_0 = arith.constant 0 : i32
    %c0_i32_1 = arith.constant 0 : i32
    return %c0_i32, %c0_i32_0 : i32, i32
  }
  func.func @transform_5(%arg0: i32) -> (i32, i32) {
    %c0_i32 = arith.constant 0 : i32
    %c0_i32_0 = arith.constant 0 : i32
    return %arg0, %c0_i32 : i32, i32
  }
}

</mosaic_0001>

<llo_original>
// kernel: mlp_layers_forward.1
$region0: #{mlp_layers_forward.1}
  #allocation0 [shape = 'u32[]', space=smem, size = 0x4, offset = 0x4, fixed_abs, tag = 'smem constant byte address 0x4 - core index']
  #allocation1 [shape = 'u32[144,128]{1,0:T(1,128)}', space=vmem, size = 0x12000, scoped, tag = 'internal scratch']
  %s0 = inlined_call_operand.vmem [shape: bf16[128,64], index: 0, kind: input, shape index: {}]
  %s1 = inlined_call_operand.vmem [shape: bf16[64,32], index: 1, kind: input, shape index: {}]
  %s2 = inlined_call_operand.vmem [shape: f32[1,32], index: 2, kind: input, shape index: {}]
  %s3 = inlined_call_operand.vmem [shape: bf16[32,16], index: 3, kind: input, shape index: {}]
  %s4 = inlined_call_operand.vmem [shape: f32[1,16], index: 4, kind: input, shape index: {}]
  %s5 = inlined_call_operand.vmem [shape: f32[128,16], index: 5, kind: output, shape index: {}]
  %s6 = sld [smem:[#allocation0]]
  $region30: #{mlp_layers_forward.1} parent=0
    _
  %s8 = ssub.s32 1, %s6
  %s9 = scalar_select 0, %s8, %s6
  // Predicated region
  $region2: #{mlp_layers_forward.1} parent=0 // pred_check
    _
  $region3: #{mlp_layers_forward.1} parent=0 // pred_check_branch
    %11 = sbr.rel (0) target = $region5
  $region4: #{mlp_layers_forward.1} parent=0 // pred_region
    _
  $region5: #{mlp_layers_forward.1} parent=0 // pred_fallthru
    _
  // Predicated region
  $region6: #{mlp_layers_forward.1} parent=0 // pred_check
    _
  $region7: #{mlp_layers_forward.1} parent=0 // pred_check_branch
    %13 = sbr.rel (0) target = $region9
  $region8: #{mlp_layers_forward.1} parent=0 // pred_region
    _
  $region9: #{mlp_layers_forward.1} parent=0 // pred_fallthru
    _
  // Predicated region
  $region10: #{mlp_layers_forward.1} parent=0 // pred_check
    _
  $region11: #{mlp_layers_forward.1} parent=0 // pred_check_branch
    %15 = sbr.rel (0) target = $region13
  $region12: #{mlp_layers_forward.1} parent=0 // pred_region
    _
  $region13: #{mlp_layers_forward.1} parent=0 // pred_fallthru
    _
  // Predicated region
  $region14: #{mlp_layers_forward.1} parent=0 // pred_check
    _
  $region15: #{mlp_layers_forward.1} parent=0 // pred_check_branch
    %17 = sbr.rel (0) target = $region17
  $region16: #{mlp_layers_forward.1} parent=0 // pred_region
    _
  $region17: #{mlp_layers_forward.1} parent=0 // pred_fallthru
    _
  // Predicated region
  $region18: #{mlp_layers_forward.1} parent=0 // pred_check
    _
  $region19: #{mlp_layers_forward.1} parent=0 // pred_check_branch
    %19 = sbr.rel (0) target = $region21
  $region20: #{mlp_layers_forward.1} parent=0 // pred_region
    _
  $region21: #{mlp_layers_forward.1} parent=0 // pred_fallthru
    _
  %v21 = vld [vmem:[%s0] sm:$0xf]
  %v22 = vld [vmem:[%s0 + $0x4] sm:$0xf]
  %v23 = vld [vmem:[%s0 + $0x8] sm:$0xf]
  %v24 = vld [vmem:[%s0 + $0xc] sm:$0xf]
  %v25 = vld [vmem:[%s0 + $0x10] sm:$0xf]
  %v26 = vld [vmem:[%s0 + $0x14] sm:$0xf]
  %v27 = vld [vmem:[%s0 + $0x18] sm:$0xf]
  %v28 = vld [vmem:[%s0 + $0x1c] sm:$0xf]
  %v29 = vld [vmem:[%s0 + $0x20] sm:$0xf]
  %v30 = vld [vmem:[%s0 + $0x24] sm:$0xf]
  %v31 = vld [vmem:[%s0 + $0x28] sm:$0xf]
  %v32 = vld [vmem:[%s0 + $0x2c] sm:$0xf]
  %v33 = vld [vmem:[%s0 + $0x30] sm:$0xf]
  %v34 = vld [vmem:[%s0 + $0x34] sm:$0xf]
  %v35 = vld [vmem:[%s0 + $0x38] sm:$0xf]
  %v36 = vld [vmem:[%s0 + $0x3c] sm:$0xf]
  %v37 = vld [vmem:[%s1] sm:$0xf]
  %v38 = vld [vmem:[%s1 + $0x4] sm:$0xf]
  %v39 = vld [vmem:[%s1 + $0x8] sm:$0xf]
  %v40 = vld [vmem:[%s1 + $0xc] sm:$0xf]
  %v41 = vld [vmem:[%s1 + $0x10] sm:$0xf]
  %v42 = vld [vmem:[%s1 + $0x14] sm:$0xf]
  %v43 = vld [vmem:[%s1 + $0x18] sm:$0xf]
  %v44 = vld [vmem:[%s1 + $0x1c] sm:$0xf]
  %v45 = vld [vmem:[%s2] sm:$0x1]
  %v47 = vlaneseq
  %v48 = vshrl.u32 %v47, 7
  %v49 = vsub.s32 0, %v48
  %v50 = vrot.slane %v45, %v49
  %v68 = vunpack.c.l.b16 %v21
  %v69 = vunpack.c.l.b16 %v22
  %v70 = vunpack.c.l.b16 %v23
  %v71 = vunpack.c.l.b16 %v24
  %v72 = vunpack.c.l.b16 %v25
  %v73 = vunpack.c.l.b16 %v26
  %v74 = vunpack.c.l.b16 %v27
  %v75 = vunpack.c.l.b16 %v28
  %v76 = vunpack.c.l.b16 %v29
  %v77 = vunpack.c.l.b16 %v30
  %v78 = vunpack.c.l.b16 %v31
  %v79 = vunpack.c.l.b16 %v32
  %v80 = vunpack.c.l.b16 %v33
  %v81 = vunpack.c.l.b16 %v34
  %v82 = vunpack.c.l.b16 %v35
  %v83 = vunpack.c.l.b16 %v36
  %v84 = vpack.c.b16 %v69, %v68
  %v85 = vpack.c.b16 %v71, %v70
  %v86 = vpack.c.b16 %v73, %v72
  %v87 = vpack.c.b16 %v75, %v74
  %v88 = vpack.c.b16 %v77, %v76
  %v89 = vpack.c.b16 %v79, %v78
  %v90 = vpack.c.b16 %v81, %v80
  %v91 = vpack.c.b16 %v83, %v82
  %v100 = vunpack.c.l.b16 %v37
  %v101 = vunpack.c.l.b16 %v38
  %v102 = vunpack.c.l.b16 %v39
  %v103 = vunpack.c.l.b16 %v40
  %v104 = vunpack.c.l.b16 %v41
  %v105 = vunpack.c.l.b16 %v42
  %v106 = vunpack.c.l.b16 %v43
  %v107 = vunpack.c.l.b16 %v44
  %v108 = vpack.c.b16 %v101, %v100
  %v109 = vpack.c.b16 %v103, %v102
  %v110 = vpack.c.b16 %v105, %v104
  %v111 = vpack.c.b16 %v107, %v106
  %vm116 = vcmask 523264
  %v118 = vsel %vm116, %v84, 0
  %v121 = vsel %vm116, %v85, 0
  %v124 = vsel %vm116, %v86, 0
  %v127 = vsel %vm116, %v87, 0
  %v130 = vsel %vm116, %v88, 0
  %v133 = vsel %vm116, %v89, 0
  %v136 = vsel %vm116, %v90, 0
  %v139 = vsel %vm116, %v91, 0
  %141 = vmatprep.subr.bf16.mxu0 0
  %142 = vmatpush1.bf16.msra.mxu0 0
  %143 = vmatprep.subr.bf16.mxu0 0
  %144 = vmatpush1.bf16.msra.mxu0 0
  %145 = vmatprep.subr.bf16.mxu0 0
  %146 = vmatpush1.bf16.msra.mxu0 0
  %147 = vmatprep.subr.bf16.mxu0 0
  %148 = vmatpush1.bf16.msra.mxu0 0
  %149 = vmatprep.subr.bf16.mxu0 0
  %150 = vmatpush1.bf16.msra.mxu0 %v111
  %151 = vmatprep.subr.bf16.mxu0 0
  %152 = vmatpush1.bf16.msra.mxu0 %v110
  %153 = vmatprep.subr.bf16.mxu0 0
  %154 = vmatpush1.bf16.msra.mxu0 %v109
  %155 = vmatprep.subr.bf16.mxu0 0
  %156 = vmatpush1.bf16.msra.mxu0 %v108
  %157 = vmatprep.subr.bf16.mxu0 0
  %158 = vmatpush2.bf16.msra.mxu0 0
  %159 = vmatprep.subr.bf16.mxu0 0
  %160 = vmatpush2.bf16.msra.mxu0 0
  %161 = vmatprep.subr.bf16.mxu0 0
  %162 = vmatpush2.bf16.msra.mxu0 0
  %163 = vmatprep.subr.bf16.mxu0 0
  %164 = vmatpush2.bf16.msra.mxu0 0
  %165 = vmatprep.subr.bf16.mxu0 0
  %166 = vmatpush2.bf16.msra.mxu0 0
  %167 = vmatprep.subr.bf16.mxu0 0
  %168 = vmatpush2.bf16.msra.mxu0 0
  %169 = vmatprep.subr.bf16.mxu0 0
  %170 = vmatpush2.bf16.msra.mxu0 0
  %171 = vmatprep.subr.bf16.mxu0 0
  %172 = vmatpush2.bf16.msra.mxu0 0
  %173 = vmatprep.mubr.bf16.mxu0 0
  %174 = vmatmul.mubr.bf16.gmra.mxu0 %v118
  %v175 = vpop.f32.mrf.mxu0
  %v176 = vadd.f32 %v50, %v175
  %v177 = vpop.f32.mrf.mxu0
  %v178 = vpop.f32.mrf.mxu0
  %v179 = vadd.f32 %v50, %v178
  %v180 = vpop.f32.mrf.mxu0
  %181 = vmatprep.mubr.bf16.mxu0 0
  %182 = vmatmul.mubr.bf16.gmra.mxu0 %v121
  %v183 = vpop.f32.mrf.mxu0
  %v184 = vadd.f32 %v50, %v183
  %v185 = vpop.f32.mrf.mxu0
  %v186 = vpop.f32.mrf.mxu0
  %v187 = vadd.f32 %v50, %v186
  %v188 = vpop.f32.mrf.mxu0
  %189 = vmatprep.mubr.bf16.mxu0 0
  %190 = vmatmul.mubr.bf16.gmra.mxu0 %v124
  %v191 = vpop.f32.mrf.mxu0
  %v192 = vadd.f32 %v50, %v191
  %v193 = vpop.f32.mrf.mxu0
  %v194 = vpop.f32.mrf.mxu0
  %v195 = vadd.f32 %v50, %v194
  %v196 = vpop.f32.mrf.mxu0
  %197 = vmatprep.mubr.bf16.mxu0 0
  %198 = vmatmul.mubr.bf16.gmra.mxu0 %v127
  %v199 = vpop.f32.mrf.mxu0
  %v200 = vadd.f32 %v50, %v199
  %v201 = vpop.f32.mrf.mxu0
  %v202 = vpop.f32.mrf.mxu0
  %v203 = vadd.f32 %v50, %v202
  %v204 = vpop.f32.mrf.mxu0
  %205 = vmatprep.mubr.bf16.mxu0 0
  %206 = vmatmul.mubr.bf16.gmra.mxu0 %v130
  %v207 = vpop.f32.mrf.mxu0
  %v208 = vadd.f32 %v50, %v207
  %v209 = vpop.f32.mrf.mxu0
  %v210 = vpop.f32.mrf.mxu0
  %v211 = vadd.f32 %v50, %v210
  %v212 = vpop.f32.mrf.mxu0
  %213 = vmatprep.mubr.bf16.mxu0 0
  %214 = vmatmul.mubr.bf16.gmra.mxu0 %v133
  %v215 = vpop.f32.mrf.mxu0
  %v216 = vadd.f32 %v50, %v215
  %v217 = vpop.f32.mrf.mxu0
  %v218 = vpop.f32.mrf.mxu0
  %v219 = vadd.f32 %v50, %v218
  %v220 = vpop.f32.mrf.mxu0
  %221 = vmatprep.mubr.bf16.mxu0 0
  %222 = vmatmul.mubr.bf16.gmra.mxu0 %v136
  %v223 = vpop.f32.mrf.mxu0
  %v224 = vadd.f32 %v50, %v223
  %v225 = vpop.f32.mrf.mxu0
  %v226 = vpop.f32.mrf.mxu0
  %v227 = vadd.f32 %v50, %v226
  %v228 = vpop.f32.mrf.mxu0
  %229 = vmatprep.mubr.bf16.mxu0 0
  %230 = vmatmul.mubr.bf16.gmra.mxu0 %v139
  %v231 = vpop.f32.mrf.mxu0
  %v232 = vadd.f32 %v50, %v231
  %v233 = vpop.f32.mrf.mxu0
  %v234 = vpop.f32.mrf.mxu0
  %v235 = vadd.f32 %v50, %v234
  %v236 = vpop.f32.mrf.mxu0
  %237 = vdwg.mxu0
  %v238 = vmax.f32 %v176, 0.0
  %v239 = vmax.f32 %v179, 0.0
  %v240 = vmax.f32 %v184, 0.0
  %v241 = vmax.f32 %v187, 0.0
  %v242 = vmax.f32 %v192, 0.0
  %v243 = vmax.f32 %v195, 0.0
  %v244 = vmax.f32 %v200, 0.0
  %v245 = vmax.f32 %v203, 0.0
  %v246 = vmax.f32 %v208, 0.0
  %v247 = vmax.f32 %v211, 0.0
  %v248 = vmax.f32 %v216, 0.0
  %v249 = vmax.f32 %v219, 0.0
  %v250 = vmax.f32 %v224, 0.0
  %v251 = vmax.f32 %v227, 0.0
  %v252 = vmax.f32 %v232, 0.0
  %v253 = vmax.f32 %v235, 0.0
  %v254 = vpack.c.bf16 %v239, %v238
  %v255 = vpack.c.bf16 %v241, %v240
  %v256 = vpack.c.bf16 %v243, %v242
  %v257 = vpack.c.bf16 %v245, %v244
  %v258 = vpack.c.bf16 %v247, %v246
  %v259 = vpack.c.bf16 %v249, %v248
  %v260 = vpack.c.bf16 %v251, %v250
  %v261 = vpack.c.bf16 %v253, %v252
  %v262 = vld [vmem:[%s3] sm:$0xf]
  %v263 = vld [vmem:[%s3 + $0x4] sm:$0xf]
  %v264 = vld [vmem:[%s3 + $0x8] sm:$0xf]
  %v265 = vld [vmem:[%s3 + $0xc] sm:$0xf]
  %v266 = vld [vmem:[%s4] sm:$0x1]
  %v268 = vlaneseq
  %v269 = vshrl.u32 %v268, 7
  %v270 = vsub.s32 0, %v269
  %v271 = vrot.slane %v266, %v270
  %v277 = vunpack.c.l.b16 %v262
  %v278 = vunpack.c.l.b16 %v263
  %v279 = vunpack.c.l.b16 %v264
  %v280 = vunpack.c.l.b16 %v265
  %v281 = vpack.c.b16 %v278, %v277
  %v282 = vpack.c.b16 %v280, %v279
  %vm285 = vcmask 261120
  %v287 = vsel %vm285, %v254, 0
  %v290 = vsel %vm285, %v255, 0
  %v293 = vsel %vm285, %v256, 0
  %v296 = vsel %vm285, %v257, 0
  %v299 = vsel %vm285, %v258, 0
  %v302 = vsel %vm285, %v259, 0
  %v305 = vsel %vm285, %v260, 0
  %v308 = vsel %vm285, %v261, 0
  %310 = vmatprep.subr.bf16.mxu0 0
  %311 = vmatpush1.bf16.msra.mxu0 0
  %312 = vmatprep.subr.bf16.mxu0 0
  %313 = vmatpush1.bf16.msra.mxu0 0
  %314 = vmatprep.subr.bf16.mxu0 0
  %315 = vmatpush1.bf16.msra.mxu0 0
  %316 = vmatprep.subr.bf16.mxu0 0
  %317 = vmatpush1.bf16.msra.mxu0 0
  %318 = vmatprep.subr.bf16.mxu0 0
  %319 = vmatpush1.bf16.msra.mxu0 0
  %320 = vmatprep.subr.bf16.mxu0 0
  %321 = vmatpush1.bf16.msra.mxu0 0
  %322 = vmatprep.subr.bf16.mxu0 0
  %323 = vmatpush1.bf16.msra.mxu0 %v282
  %324 = vmatprep.subr.bf16.mxu0 0
  %325 = vmatpush1.bf16.msra.mxu0 %v281
  %326 = vmatprep.subr.bf16.mxu0 0
  %327 = vmatpush2.bf16.msra.mxu0 0
  %328 = vmatprep.subr.bf16.mxu0 0
  %329 = vmatpush2.bf16.msra.mxu0 0
  %330 = vmatprep.subr.bf16.mxu0 0
  %331 = vmatpush2.bf16.msra.mxu0 0
  %332 = vmatprep.subr.bf16.mxu0 0
  %333 = vmatpush2.bf16.msra.mxu0 0
  %334 = vmatprep.subr.bf16.mxu0 0
  %335 = vmatpush2.bf16.msra.mxu0 0
  %336 = vmatprep.subr.bf16.mxu0 0
  %337 = vmatpush2.bf16.msra.mxu0 0
  %338 = vmatprep.subr.bf16.mxu0 0
  %339 = vmatpush2.bf16.msra.mxu0 0
  %340 = vmatprep.subr.bf16.mxu0 0
  %341 = vmatpush2.bf16.msra.mxu0 0
  %342 = vmatprep.mubr.bf16.mxu0 0
  %343 = vmatmul.mubr.bf16.gmra.mxu0 %v287
  %v344 = vpop.f32.mrf.mxu0
  %v345 = vadd.f32 %v271, %v344
  %v346 = vpop.f32.mrf.mxu0
  %v347 = vpop.f32.mrf.mxu0
  %v348 = vadd.f32 %v271, %v347
  %v349 = vpop.f32.mrf.mxu0
  %350 = vmatprep.mubr.bf16.mxu0 0
  %351 = vmatmul.mubr.bf16.gmra.mxu0 %v290
  %v352 = vpop.f32.mrf.mxu0
  %v353 = vadd.f32 %v271, %v352
  %v354 = vpop.f32.mrf.mxu0
  %v355 = vpop.f32.mrf.mxu0
  %v356 = vadd.f32 %v271, %v355
  %v357 = vpop.f32.mrf.mxu0
  %358 = vmatprep.mubr.bf16.mxu0 0
  %359 = vmatmul.mubr.bf16.gmra.mxu0 %v293
  %v360 = vpop.f32.mrf.mxu0
  %v361 = vadd.f32 %v271, %v360
  %v362 = vpop.f32.mrf.mxu0
  %v363 = vpop.f32.mrf.mxu0
  %v364 = vadd.f32 %v271, %v363
  %v365 = vpop.f32.mrf.mxu0
  %366 = vmatprep.mubr.bf16.mxu0 0
  %367 = vmatmul.mubr.bf16.gmra.mxu0 %v296
  %v368 = vpop.f32.mrf.mxu0
  %v369 = vadd.f32 %v271, %v368
  %v370 = vpop.f32.mrf.mxu0
  %v371 = vpop.f32.mrf.mxu0
  %v372 = vadd.f32 %v271, %v371
  %v373 = vpop.f32.mrf.mxu0
  %374 = vmatprep.mubr.bf16.mxu0 0
  %375 = vmatmul.mubr.bf16.gmra.mxu0 %v299
  %v376 = vpop.f32.mrf.mxu0
  %v377 = vadd.f32 %v271, %v376
  %v378 = vpop.f32.mrf.mxu0
  %v379 = vpop.f32.mrf.mxu0
  %v380 = vadd.f32 %v271, %v379
  %v381 = vpop.f32.mrf.mxu0
  %382 = vmatprep.mubr.bf16.mxu0 0
  %383 = vmatmul.mubr.bf16.gmra.mxu0 %v302
  %v384 = vpop.f32.mrf.mxu0
  %v385 = vadd.f32 %v271, %v384
  %v386 = vpop.f32.mrf.mxu0
  %v387 = vpop.f32.mrf.mxu0
  %v388 = vadd.f32 %v271, %v387
  %v389 = vpop.f32.mrf.mxu0
  %390 = vmatprep.mubr.bf16.mxu0 0
  %391 = vmatmul.mubr.bf16.gmra.mxu0 %v305
  %v392 = vpop.f32.mrf.mxu0
  %v393 = vadd.f32 %v271, %v392
  %v394 = vpop.f32.mrf.mxu0
  %v395 = vpop.f32.mrf.mxu0
  %v396 = vadd.f32 %v271, %v395
  %v397 = vpop.f32.mrf.mxu0
  %398 = vmatprep.mubr.bf16.mxu0 0
  %399 = vmatmul.mubr.bf16.gmra.mxu0 %v308
  %v400 = vpop.f32.mrf.mxu0
  %v401 = vadd.f32 %v271, %v400
  %v402 = vpop.f32.mrf.mxu0
  %v403 = vpop.f32.mrf.mxu0
  %v404 = vadd.f32 %v271, %v403
  %v405 = vpop.f32.mrf.mxu0
  %406 = vdwg.mxu0
  %v407 = vmax.f32 %v345, 0.0
  %v408 = vmax.f32 %v348, 0.0
  %v409 = vmax.f32 %v353, 0.0
  %v410 = vmax.f32 %v356, 0.0
  %v411 = vmax.f32 %v361, 0.0
  %v412 = vmax.f32 %v364, 0.0
  %v413 = vmax.f32 %v369, 0.0
  %v414 = vmax.f32 %v372, 0.0
  %v415 = vmax.f32 %v377, 0.0
  %v416 = vmax.f32 %v380, 0.0
  %v417 = vmax.f32 %v385, 0.0
  %v418 = vmax.f32 %v388, 0.0
  %v419 = vmax.f32 %v393, 0.0
  %v420 = vmax.f32 %v396, 0.0
  %v421 = vmax.f32 %v401, 0.0
  %v422 = vmax.f32 %v404, 0.0
  %vm423 = vcmask 130048
  %424 = vst.msk [vmem:[%s5] sm:$0xff] %vm423, %v407
  %425 = vst.msk [vmem:[%s5 + $0x8] sm:$0xff] %vm423, %v408
  %426 = vst.msk [vmem:[%s5 + $0x10] sm:$0xff] %vm423, %v409
  %427 = vst.msk [vmem:[%s5 + $0x18] sm:$0xff] %vm423, %v410
  %428 = vst.msk [vmem:[%s5 + $0x20] sm:$0xff] %vm423, %v411
  %429 = vst.msk [vmem:[%s5 + $0x28] sm:$0xff] %vm423, %v412
  %430 = vst.msk [vmem:[%s5 + $0x30] sm:$0xff] %vm423, %v413
  %431 = vst.msk [vmem:[%s5 + $0x38] sm:$0xff] %vm423, %v414
  %432 = vst.msk [vmem:[%s5 + $0x40] sm:$0xff] %vm423, %v415
  %433 = vst.msk [vmem:[%s5 + $0x48] sm:$0xff] %vm423, %v416
  %434 = vst.msk [vmem:[%s5 + $0x50] sm:$0xff] %vm423, %v417
  %435 = vst.msk [vmem:[%s5 + $0x58] sm:$0xff] %vm423, %v418
  %436 = vst.msk [vmem:[%s5 + $0x60] sm:$0xff] %vm423, %v419
  %437 = vst.msk [vmem:[%s5 + $0x68] sm:$0xff] %vm423, %v420
  %438 = vst.msk [vmem:[%s5 + $0x70] sm:$0xff] %vm423, %v421
  %439 = vst.msk [vmem:[%s5 + $0x78] sm:$0xff] %vm423, %v422
  // Predicated region
  $region22: #{mlp_layers_forward.1} parent=0 // pred_check
    _
  $region23: #{mlp_layers_forward.1} parent=0 // pred_check_branch
    %441 = sbr.rel (0) target = $region25
  $region24: #{mlp_layers_forward.1} parent=0 // pred_region
    _
  $region25: #{mlp_layers_forward.1} parent=0 // pred_fallthru
    _
  // Predicated region
  $region26: #{mlp_layers_forward.1} parent=0 // pred_check
    _
  $region27: #{mlp_layers_forward.1} parent=0 // pred_check_branch
    %443 = sbr.rel (0) target = $region29
  $region28: #{mlp_layers_forward.1} parent=0 // pred_region
    _
  $region29: #{mlp_layers_forward.1} parent=0 // pred_fallthru
    _

</llo_original>
